<compile_context>
chip_gen: v5e
topology: v5e:2x2
jax: 0.10.0
libtpu: 0.0.40
codegen_flags: <defaults>
</compile_context>

<pallas_src>
import math

import jax
import jax.numpy as jnp
from jax.experimental import pallas as pl
from jax.experimental.pallas import tpu as pltpu


def _round_up(x, m):
    return ((x + m - 1) // m) * m


def _vmem_cap_bytes(default=64 << 20):
    try:
        info = pltpu.get_tpu_info()
        cap = getattr(info, "vmem_capacity_bytes", None)
        if cap:
            return int(cap)
    except Exception:
        pass
    return default


def _minifloat_linear_kernel(x_ref, w_ref, b_ref, o_ref, acc_ref):
    # x_ref  : (tm, tk)  bfloat16        activation tile (pre-cast in wrapper)
    # w_ref  : (tk, tn)  float8_e4m3fn   weight tile (pre-transposed to (K, N))
    # b_ref  : (1,  tn)  float32         bias tile
    # o_ref  : (tm, tn)  float32         output tile
    # acc_ref: (tm, tn)  float32 scratch accumulator over the K grid axis
    k = pl.program_id(2)

    @pl.when(k == 0)
    def _():
        acc_ref[...] = jnp.zeros_like(acc_ref)

    # fp8 e4m3 values are exactly representable in bf16: direct cast, then MXU
    # matmul in bf16 with f32 accumulation.
    acc_ref[...] += jnp.dot(
        x_ref[...],
        w_ref[...].astype(jnp.bfloat16),
        preferred_element_type=jnp.float32,
    )

    @pl.when(k == pl.num_programs(2) - 1)
    def _():
        o_ref[...] = acc_ref[...] + b_ref[...]


def quantize_minifloat_params(weight_f32, bias_f32=None, linear_e4m2=True):
    """Mimics MinifloatLinear.__init__ (storage-side quantization, done once)."""
    w = weight_f32
    if linear_e4m2:
        # double rounding f32 -> e5m2 -> e4m3fn (e5m2 -> f32 is exact)
        w = w.astype(jnp.float8_e5m2).astype(jnp.float32)
    w_fp8 = w.astype(jnp.float8_e4m3fn)                      # (N, K) stored parameter
    b_fp8 = None
    if bias_f32 is not None:
        b_fp8 = bias_f32.astype(jnp.float8_e4m3fn)           # (N,) stored parameter
    return w_fp8, b_fp8


def prepare_minifloat_linear(w_fp8, b_fp8=None, *, tn_max=512, tk_max=2048):
    """One-time (init) layout prep: transpose to (K, N), pad N/K, dequantize bias.

    Done once so the per-call forward never re-pads / re-copies the weight matrix.
    """
    N, K = w_fp8.shape

    tn = min(tn_max, _round_up(N, 128))
    n_pad = _round_up(N, tn)

    if K <= tk_max:
        tk = K
        k_pad = K
    else:
        tk = tk_max                          # multiple of 128
        k_pad = _round_up(K, tk)

    # Transpose / pad in f32 (exact for e4m3 values), then re-store as fp8 (exact).
    w_f32 = w_fp8.astype(jnp.float32)                        # (N, K), exact dequant
    w_t = jnp.zeros((k_pad, n_pad), jnp.float32).at[:K, :N].set(w_f32.T)
    w_t_fp8 = w_t.astype(jnp.float8_e4m3fn)                  # padded rows/cols are 0

    # Bias dequantized once; zero bias when the module has bias=None (same result).
    b_full = jnp.zeros((1, n_pad), jnp.float32)
    if b_fp8 is not None:
        b_full = b_full.at[0, :N].set(b_fp8.astype(jnp.float32))

    return {
        "w_t_fp8": w_t_fp8,        # (k_pad, n_pad) float8_e4m3fn
        "bias": b_full,            # (1, n_pad)     float32
        "tn": tn,
        "tk": tk,
        "out_features": N,
        "in_features": K,
    }


def minifloat_linear(x, params, *, tm_max=256):
    """Pallas equivalent of MinifloatLinear.forward.

    x: (..., in_features) float
    params: output of prepare_minifloat_linear (fp8 weights in (K, N) layout).
    """
    w_t_fp8 = params["w_t_fp8"]
    b_full = params["bias"]
    tn = params["tn"]
    tk = params["tk"]
    N = params["out_features"]
    K = params["in_features"]
    k_pad, n_pad = w_t_fp8.shape

    *lead, k_in = x.shape
    assert k_in == K, f"in_features mismatch: {k_in} vs {K}"
    M = int(math.prod(lead)) if lead else 1

    # M tiling: MXU-friendly tiles, never bigger than the (8-rounded) M.
    if M <= tm_max:
        tm = _round_up(M, 8)
        m_pad = tm
    else:
        tm = tm_max
        m_pad = _round_up(M, tm)

    # Reshape + bf16 cast + pad in one bf16 pass (no extra f32 copy in HBM).
    x2 = x.reshape(M, K).astype(jnp.bfloat16)
    if m_pad != M or k_pad != K:
        x2 = jnp.pad(x2, ((0, m_pad - M), (0, k_pad - K)))

    m_tiles = m_pad // tm
    n_tiles = n_pad // tn
    k_tiles = k_pad // tk
    grid = (m_tiles, n_tiles, k_tiles)   # M outer, N middle, K inner (reduction)

    # Conservative VMEM budget: double-buffered inputs/outputs + f32 accumulator.
    vmem_needed = (
        2 * tm * tk * 2        # x tile (bf16), double-buffered
        + 2 * tk * tn * 1      # fp8 weight tile, double-buffered
        + 2 * tn * 4           # bias tile
        + 2 * tm * tn * 4      # output tile
        + tm * tn * 4          # f32 accumulator scratch
    )
    cap = _vmem_cap_bytes()
    vmem_limit = min(max(vmem_needed + (8 << 20), 32 << 20), cap - (8 << 20))
    vmem_limit = int(max(vmem_limit, vmem_needed + (4 << 20)))

    # Actual traffic: x streamed once (re-read per N tile only if K is grid-tiled),
    # fp8 weights streamed once per M tile, f32 output written once.
    x_reads = 1 if k_tiles == 1 else n_tiles
    cost = pl.CostEstimate(
        flops=2 * m_pad * n_pad * k_pad,
        transcendentals=0,
        bytes_accessed=(
            m_pad * k_pad * 2 * x_reads
            + k_pad * n_pad * 1 * m_tiles
            + m_pad * n_pad * 4
            + n_pad * 4 * m_tiles
        ),
    )

    out = pl.pallas_call(
        _minifloat_linear_kernel,
        out_shape=jax.ShapeDtypeStruct((m_pad, n_pad), jnp.float32),
        grid=grid,
        in_specs=[
            pl.BlockSpec((tm, tk), lambda i, j, k: (i, k)),   # bf16 activations
            pl.BlockSpec((tk, tn), lambda i, j, k: (k, j)),   # fp8 weights (streamed)
            pl.BlockSpec((1, tn), lambda i, j, k: (0, j)),    # f32 bias
        ],
        out_specs=pl.BlockSpec((tm, tn), lambda i, j, k: (i, j)),
        scratch_shapes=[pltpu.VMEM((tm, tn), jnp.float32)],
        compiler_params=pltpu.CompilerParams(
            dimension_semantics=("parallel", "parallel", "arbitrary"),
            vmem_limit_bytes=vmem_limit,
        ),
        cost_estimate=cost,
    )(x2, w_t_fp8, b_full)

    return out[:M, :N].reshape(*lead, N)


if __name__ == "__main__":
    key = jax.random.PRNGKey(0)
    k_w, k_b, k_x = jax.random.split(key, 3)

    batch, seq, in_features, out_features = 2, 7, 64, 96

    weight_f32 = jax.random.normal(k_w, (out_features, in_features), jnp.float32) * 0.1
    bias_f32 = jax.random.normal(k_b, (out_features,), jnp.float32) * 0.05
    x = jax.random.normal(k_x, (batch, seq, in_features), jnp.float32)

    # __init__-time quantization (e5m2 round-trip then e4m3fn) + one-time layout prep.
    w_fp8, b_fp8 = quantize_minifloat_params(weight_f32, bias_f32, linear_e4m2=True)
    params = prepare_minifloat_linear(w_fp8, b_fp8)

    y = minifloat_linear(x, params)
    y = jax.block_until_ready(y)

    # Pure-JAX reference of the PyTorch forward (f32 dequant + F.linear).
    full_w = w_fp8.astype(jnp.float32)                 # (out_f, in_f)
    full_b = b_fp8.astype(jnp.float32)
    ref = jnp.einsum("bsk,nk->bsn", x, full_w) + full_b

    assert y.shape == (batch, seq, out_features)
    # Kernel uses bf16 MXU operands (fp8 weights are exact in bf16; only activations
    # are bf16-rounded) -> compare against the f32 reference with loosened tolerance.
    assert jnp.allclose(y, ref, atol=2e-2, rtol=2e-2), "mismatch vs reference"
    print("KERNEL_OK")
</pallas_src>

<mosaic_0001>
module attributes {stable_mosaic.version = 11 : i64} {
  func.func @_minifloat_linear_kernel(%arg0: i32, %arg1: i32, %arg2: i32, %arg3: memref<16x64xbf16, #tpu.memory_space<vmem>>, %arg4: memref<64x128xf8E4M3FN, #tpu.memory_space<vmem>>, %arg5: memref<1x128xf32, #tpu.memory_space<vmem>>, %arg6: memref<16x128xf32, #tpu.memory_space<vmem>>, %arg7: memref<16x128xf32, #tpu.memory_space<vmem>>) attributes {dimension_semantics = [#tpu.dimension_semantics<parallel>, #tpu.dimension_semantics<parallel>, #tpu.dimension_semantics<arbitrary>], iteration_bounds = array<i64: 1, 1, 1>, scalar_prefetch = 0 : i64, scratch_operands = 1 : i64, tpu.core_type = #tpu.core_type<tc>, window_params = [{transform_indices = @transform_0, window_bounds = array<i64: 16, 64>}, {transform_indices = @transform_1, window_bounds = array<i64: 64, 128>}, {transform_indices = @transform_2, window_bounds = array<i64: 1, 128>}, {transform_indices = @transform_3, window_bounds = array<i64: 16, 128>}]} {
    %c0_i32 = arith.constant 0 : i32
    %0 = arith.cmpi eq, %arg2, %c0_i32 : i32
    %1 = arith.extui %0 : i1 to i32
    %c0_i32_0 = arith.constant 0 : i32
    %2 = arith.cmpi ne, %1, %c0_i32_0 : i32
    scf.if %2 {
      %cst_10 = arith.constant 0.000000e+00 : f32
      %13 = vector.broadcast %cst_10 : f32 to vector<16x128xf32>
      %c0_11 = arith.constant 0 : index
      %c0_12 = arith.constant 0 : index
      %14 = vector.load %arg7[%c0_11, %c0_12] : memref<16x128xf32, #tpu.memory_space<vmem>>, vector<16x128xf32>
      tpu.vector_store %arg7[%c0_11, %c0_12], %13 {strides = array<i32>} : memref<16x128xf32, #tpu.memory_space<vmem>>, vector<16x128xf32>,
    } else {
    }
    %c0 = arith.constant 0 : index
    %c0_1 = arith.constant 0 : index
    %3 = vector.load %arg7[%c0, %c0_1] : memref<16x128xf32, #tpu.memory_space<vmem>>, vector<16x128xf32>
    %c0_2 = arith.constant 0 : index
    %c0_3 = arith.constant 0 : index
    %4 = vector.load %arg3[%c0_2, %c0_3] : memref<16x64xbf16, #tpu.memory_space<vmem>>, vector<16x64xbf16>
    %c0_4 = arith.constant 0 : index
    %c0_5 = arith.constant 0 : index
    %5 = vector.load %arg4[%c0_4, %c0_5] : memref<64x128xf8E4M3FN, #tpu.memory_space<vmem>>, vector<64x128xf8E4M3FN>
    %6 = arith.extf %5 : vector<64x128xf8E4M3FN> to vector<64x128xbf16>
    %cst = arith.constant dense<0.000000e+00> : vector<16x128xf32>
    %7 = tpu.matmul %4, %6, %cst {dimension_numbers = #tpu.dot_dimension_numbers<[1], [0], [0], [1], [0, 0, 1, 1], [], []>} : vector<16x64xbf16>, vector<64x128xbf16>, vector<16x128xf32> -> vector<16x128xf32>
    %8 = arith.addf %3, %7 : vector<16x128xf32>
    %c0_6 = arith.constant 0 : index
    %c0_7 = arith.constant 0 : index
    %9 = vector.load %arg7[%c0_6, %c0_7] : memref<16x128xf32, #tpu.memory_space<vmem>>, vector<16x128xf32>
    tpu.vector_store %arg7[%c0_6, %c0_7], %8 {strides = array<i32>} : memref<16x128xf32, #tpu.memory_space<vmem>>, vector<16x128xf32>,
    %c0_i32_8 = arith.constant 0 : i32
    %10 = arith.cmpi eq, %arg2, %c0_i32_8 : i32
    %11 = arith.extui %10 : i1 to i32
    %c0_i32_9 = arith.constant 0 : i32
    %12 = arith.cmpi ne, %11, %c0_i32_9 : i32
    scf.if %12 {
      %c0_10 = arith.constant 0 : index
      %c0_11 = arith.constant 0 : index
      %13 = vector.load %arg7[%c0_10, %c0_11] : memref<16x128xf32, #tpu.memory_space<vmem>>, vector<16x128xf32>
      %c0_12 = arith.constant 0 : index
      %c0_13 = arith.constant 0 : index
      %14 = vector.load %arg5[%c0_12, %c0_13] : memref<1x128xf32, #tpu.memory_space<vmem>>, vector<1x128xf32>
      %15 = vector.broadcast %14 : vector<1x128xf32> to vector<16x128xf32>
      %16 = arith.addf %13, %15 : vector<16x128xf32>
      %c0_14 = arith.constant 0 : index
      %c0_15 = arith.constant 0 : index
      %17 = vector.load %arg6[%c0_14, %c0_15] : memref<16x128xf32, #tpu.memory_space<vmem>>, vector<16x128xf32>
      tpu.vector_store %arg6[%c0_14, %c0_15], %16 {strides = array<i32>} : memref<16x128xf32, #tpu.memory_space<vmem>>, vector<16x128xf32>,
    } else {
    }
    return
  }
  func.func @transform_0(%arg0: i32, %arg1: i32, %arg2: i32) -> (i32, i32) {
    %c0_i32 = arith.constant 0 : i32
    return %arg0, %arg2 : i32, i32
  }
  func.func @transform_1(%arg0: i32, %arg1: i32, %arg2: i32) -> (i32, i32) {
    %c0_i32 = arith.constant 0 : i32
    return %arg2, %arg1 : i32, i32
  }
  func.func @transform_2(%arg0: i32, %arg1: i32, %arg2: i32) -> (i32, i32) {
    %c0_i32 = arith.constant 0 : i32
    %c0_i32_0 = arith.constant 0 : i32
    return %c0_i32, %arg1 : i32, i32
  }
  func.func @transform_3(%arg0: i32, %arg1: i32, %arg2: i32) -> (i32, i32) {
    %c0_i32 = arith.constant 0 : i32
    return %arg0, %arg1 : i32, i32
  }
}

</mosaic_0001>

<llo_original>
// kernel: tpu_custom_call.1
$region0: #{tpu_custom_call.1}
  #allocation0 [shape = 'u32[]', space=smem, size = 0x4, offset = 0x4, fixed_abs, tag = 'smem constant byte address 0x4 - core index']
  #allocation1 [shape = 'u32[72,128]{1,0:T(1,128)}', space=vmem, size = 0x9000, scoped, tag = 'internal scratch']
  #allocation2 [shape = 'f32[16,128]{1,0:T(8,128)}', space=vmem, size = 0x2000, scoped, tag = 'scratch operand']
  %s0 = inlined_call_operand.hbm [shape: bf16[16,64], index: 0, kind: input, shape index: {}]
  %s1 = inlined_call_operand.hbm [shape: f8e4m3fn[64,128], index: 1, kind: input, shape index: {}]
  %s2 = inlined_call_operand.vmem [shape: f32[1,128], index: 2, kind: input, shape index: {}]
  %s3 = inlined_call_operand.hbm [shape: f32[16,128], index: 3, kind: output, shape index: {}]
  %s4 = sld [smem:[#allocation0]]
  $region46: #{tpu_custom_call.1} parent=0
    _
  %s6 = ssub.s32 1, %s4
  %s7 = scalar_select 0, %s6, %s4
  $region1: #{tpu_custom_call.1} parent=0
    #allocation3 [shape = 'u8[4096]{0}', space=vmem, size = 0x1000, scoped, tag = 'input window, operand 0, single buffered']
    #allocation4 [shape = 's32[1]{0}', space=sflag, size = 0x4, scoped, tag = 'scoped memory for tpu_custom_call.1']
    #allocation5 [shape = 's32[1]{0}', space=sflag, size = 0x4, scoped, tag = 'scoped memory for tpu_custom_call.1']
    #allocation6 [shape = 'u8[8192]{0}', space=vmem, size = 0x2000, scoped, tag = 'input window, operand 1, single buffered']
    #allocation7 [shape = 's32[1]{0}', space=sflag, size = 0x4, scoped, tag = 'scoped memory for tpu_custom_call.1']
    #allocation8 [shape = 'u8[8192]{0}', space=vmem, size = 0x2000, scoped, tag = 'output window, operand 0, single buffered']
    %8 = vsyncpa [#allocation4], 0
    %9 = vsyncpa [#allocation7], 0
    %10 = vsyncpa [#allocation5], 0
    // Predicated region
    $region2: #{tpu_custom_call.1} parent=1 // pred_check
      _
    $region3: #{tpu_custom_call.1} parent=1 // pred_check_branch
      %12 = sbr.rel (0) target = $region5
    $region4: #{tpu_custom_call.1} parent=1 // pred_region
      %14 = vsyncadd [#allocation4], 0
      %s15 = sshll.u32 %s0, 4
      %s16 = int_to_ptr.hbm [resolvable:$true] %s15
      %s17 = sshll.u32 [#allocation3], 4
      %s18 = int_to_ptr.vmem [resolvable:$true] %s17
      %23 = dma.hbm_to_vmem [thread:$0]  %s16, 128, %s18, [#allocation4], 64, 64, 4
    $region5: #{tpu_custom_call.1} parent=1 // pred_fallthru
      _
    // Predicated region
    $region6: #{tpu_custom_call.1} parent=1 // pred_check
      _
    $region7: #{tpu_custom_call.1} parent=1 // pred_check_branch
      %25 = sbr.rel (0) target = $region9
    $region8: #{tpu_custom_call.1} parent=1 // pred_region
      %27 = vsyncadd [#allocation7], 0
      %s28 = sshll.u32 %s1, 4
      %s29 = int_to_ptr.hbm [resolvable:$true] %s28
      %s30 = sshll.u32 [#allocation6], 4
      %s31 = int_to_ptr.vmem [resolvable:$true] %s30
      %36 = dma.hbm_to_vmem [thread:$0]  %s29, 256, %s31, [#allocation7], 128, 128, 8
    $region9: #{tpu_custom_call.1} parent=1 // pred_fallthru
      _
    // Predicated region
    $region10: #{tpu_custom_call.1} parent=1 // pred_check
      _
    $region11: #{tpu_custom_call.1} parent=1 // pred_check_branch
      %38 = sbr.rel (0) target = $region13
    $region12: #{tpu_custom_call.1} parent=1 // pred_region
      _
    $region13: #{tpu_custom_call.1} parent=1 // pred_fallthru
      _
    // Predicated region
    $region14: #{tpu_custom_call.1} parent=1 // pred_check
      _
    $region15: #{tpu_custom_call.1} parent=1 // pred_check_branch
      %40 = sbr.rel (0) target = $region17
    $region16: #{tpu_custom_call.1} parent=1 // pred_region
      %42 = dma.done [#allocation4], 128
    $region17: #{tpu_custom_call.1} parent=1 // pred_fallthru
      _
    // Predicated region
    $region18: #{tpu_custom_call.1} parent=1 // pred_check
      _
    $region19: #{tpu_custom_call.1} parent=1 // pred_check_branch
      %44 = sbr.rel (0) target = $region21
    $region20: #{tpu_custom_call.1} parent=1 // pred_region
      %46 = dma.done [#allocation7], 256
    $region21: #{tpu_custom_call.1} parent=1 // pred_fallthru
      _
    %p48 = scmp.eq.s32.totalorder 0, 0
    // Predicated region
    $region22: #{tpu_custom_call.1} parent=1 // pred_check
      %p49 = pneg %p48
    $region23: #{tpu_custom_call.1} parent=1 // pred_check_branch
      %51 = sbr.rel (%p49) target = $region25
    $region24: #{tpu_custom_call.1} parent=1 // pred_region
      %52 = vst [vmem:[#allocation2] sm:$0xff] 0.0
      %53 = vst [vmem:[#allocation2 + $0x8] sm:$0xff] 0.0
    $region25: #{tpu_custom_call.1} parent=1 // pred_fallthru
      _
    %v54 = vld [vmem:[#allocation2] sm:$0xff]
    %v55 = vld [vmem:[#allocation2 + $0x8] sm:$0xff]
    %v56 = vld [vmem:[#allocation3] sm:$0xf]
    %v57 = vld [vmem:[#allocation3 + $0x4] sm:$0xf]
    %v58 = vld [vmem:[#allocation6] sm:$0xff]
    %v59 = vld [vmem:[#allocation6 + $0x8] sm:$0xff]
    $region26: #{tpu_custom_call.1} parent=1
      #allocation9 [shape = 'u8[4096]{0}', space=vmem, size = 0x1000, scoped, tag = 'scoped memory for tpu_custom_call.1']
      %60 = vst [vmem:[#allocation9] sm:$0xff] %v58
      %v61 = vld [vmem:[#allocation9] sm:$0x3]
      %v62 = vunpack.c.0.f8e4m3b11 %v61
      %v63 = vunpack.c.1.f8e4m3b11 %v61
      %v64 = vunpack.c.2.f8e4m3b11 %v61
      %v65 = vunpack.c.3.f8e4m3b11 %v61
      %v66 = vand.u32 2147483647, %v62
      %vm67 = vcmp.gt.f32.partialorder %v66, 29.0
      %vm68 = vcmp.ne.f32.partialorder %v62, %v62
      %v69 = vmul.f32 %v62, 16.0
      %v70 = vsel %vm68, -0.0, %v69
      %v71 = vsel %vm67, nan, %v70
      %v72 = vand.u32 2147483647, %v63
      %vm73 = vcmp.gt.f32.partialorder %v72, 29.0
      %vm74 = vcmp.ne.f32.partialorder %v63, %v63
      %v75 = vmul.f32 %v63, 16.0
      %v76 = vsel %vm74, -0.0, %v75
      %v77 = vsel %vm73, nan, %v76
      %v78 = vand.u32 2147483647, %v64
      %vm79 = vcmp.gt.f32.partialorder %v78, 29.0
      %vm80 = vcmp.ne.f32.partialorder %v64, %v64
      %v81 = vmul.f32 %v64, 16.0
      %v82 = vsel %vm80, -0.0, %v81
      %v83 = vsel %vm79, nan, %v82
      %v84 = vand.u32 2147483647, %v65
      %vm85 = vcmp.gt.f32.partialorder %v84, 29.0
      %vm86 = vcmp.ne.f32.partialorder %v65, %v65
      %v87 = vmul.f32 %v65, 16.0
      %v88 = vsel %vm86, -0.0, %v87
      %v89 = vsel %vm85, nan, %v88
    $region27: #{tpu_custom_call.1} parent=1
      #allocation10 [shape = 'u8[4096]{0}', space=vmem, size = 0x1000, scoped, tag = 'scoped memory for tpu_custom_call.1']
      %90 = vst [vmem:[#allocation10] sm:$0xff] %v58
      %s91 = scalar_lea.vmem [#allocation10], 2
      %v92 = vld [vmem:[%s91] sm:$0x3]
      %v93 = vunpack.c.0.f8e4m3b11 %v92
      %v94 = vunpack.c.1.f8e4m3b11 %v92
      %v95 = vunpack.c.2.f8e4m3b11 %v92
      %v96 = vunpack.c.3.f8e4m3b11 %v92
      %v97 = vand.u32 2147483647, %v93
      %vm98 = vcmp.gt.f32.partialorder %v97, 29.0
      %vm99 = vcmp.ne.f32.partialorder %v93, %v93
      %v100 = vmul.f32 %v93, 16.0
      %v101 = vsel %vm99, -0.0, %v100
      %v102 = vsel %vm98, nan, %v101
      %v103 = vand.u32 2147483647, %v94
      %vm104 = vcmp.gt.f32.partialorder %v103, 29.0
      %vm105 = vcmp.ne.f32.partialorder %v94, %v94
      %v106 = vmul.f32 %v94, 16.0
      %v107 = vsel %vm105, -0.0, %v106
      %v108 = vsel %vm104, nan, %v107
      %v109 = vand.u32 2147483647, %v95
      %vm110 = vcmp.gt.f32.partialorder %v109, 29.0
      %vm111 = vcmp.ne.f32.partialorder %v95, %v95
      %v112 = vmul.f32 %v95, 16.0
      %v113 = vsel %vm111, -0.0, %v112
      %v114 = vsel %vm110, nan, %v113
      %v115 = vand.u32 2147483647, %v96
      %vm116 = vcmp.gt.f32.partialorder %v115, 29.0
      %vm117 = vcmp.ne.f32.partialorder %v96, %v96
      %v118 = vmul.f32 %v96, 16.0
      %v119 = vsel %vm117, -0.0, %v118
      %v120 = vsel %vm116, nan, %v119
    $region28: #{tpu_custom_call.1} parent=1
      #allocation11 [shape = 'u8[4096]{0}', space=vmem, size = 0x1000, scoped, tag = 'scoped memory for tpu_custom_call.1']
      %121 = vst [vmem:[#allocation11] sm:$0xff] %v58
      %s122 = scalar_lea.vmem [#allocation11], 4
      %v123 = vld [vmem:[%s122] sm:$0x3]
      %v124 = vunpack.c.0.f8e4m3b11 %v123
      %v125 = vunpack.c.1.f8e4m3b11 %v123
      %v126 = vunpack.c.2.f8e4m3b11 %v123
      %v127 = vunpack.c.3.f8e4m3b11 %v123
      %v128 = vand.u32 2147483647, %v124
      %vm129 = vcmp.gt.f32.partialorder %v128, 29.0
      %vm130 = vcmp.ne.f32.partialorder %v124, %v124
      %v131 = vmul.f32 %v124, 16.0
      %v132 = vsel %vm130, -0.0, %v131
      %v133 = vsel %vm129, nan, %v132
      %v134 = vand.u32 2147483647, %v125
      %vm135 = vcmp.gt.f32.partialorder %v134, 29.0
      %vm136 = vcmp.ne.f32.partialorder %v125, %v125
      %v137 = vmul.f32 %v125, 16.0
      %v138 = vsel %vm136, -0.0, %v137
      %v139 = vsel %vm135, nan, %v138
      %v140 = vand.u32 2147483647, %v126
      %vm141 = vcmp.gt.f32.partialorder %v140, 29.0
      %vm142 = vcmp.ne.f32.partialorder %v126, %v126
      %v143 = vmul.f32 %v126, 16.0
      %v144 = vsel %vm142, -0.0, %v143
      %v145 = vsel %vm141, nan, %v144
      %v146 = vand.u32 2147483647, %v127
      %vm147 = vcmp.gt.f32.partialorder %v146, 29.0
      %vm148 = vcmp.ne.f32.partialorder %v127, %v127
      %v149 = vmul.f32 %v127, 16.0
      %v150 = vsel %vm148, -0.0, %v149
      %v151 = vsel %vm147, nan, %v150
    $region29: #{tpu_custom_call.1} parent=1
      #allocation12 [shape = 'u8[4096]{0}', space=vmem, size = 0x1000, scoped, tag = 'scoped memory for tpu_custom_call.1']
      %152 = vst [vmem:[#allocation12] sm:$0xff] %v58
      %s153 = scalar_lea.vmem [#allocation12], 6
      %v154 = vld [vmem:[%s153] sm:$0x3]
      %v155 = vunpack.c.0.f8e4m3b11 %v154
      %v156 = vunpack.c.1.f8e4m3b11 %v154
      %v157 = vunpack.c.2.f8e4m3b11 %v154
      %v158 = vunpack.c.3.f8e4m3b11 %v154
      %v159 = vand.u32 2147483647, %v155
      %vm160 = vcmp.gt.f32.partialorder %v159, 29.0
      %vm161 = vcmp.ne.f32.partialorder %v155, %v155
      %v162 = vmul.f32 %v155, 16.0
      %v163 = vsel %vm161, -0.0, %v162
      %v164 = vsel %vm160, nan, %v163
      %v165 = vand.u32 2147483647, %v156
      %vm166 = vcmp.gt.f32.partialorder %v165, 29.0
      %vm167 = vcmp.ne.f32.partialorder %v156, %v156
      %v168 = vmul.f32 %v156, 16.0
      %v169 = vsel %vm167, -0.0, %v168
      %v170 = vsel %vm166, nan, %v169
      %v171 = vand.u32 2147483647, %v157
      %vm172 = vcmp.gt.f32.partialorder %v171, 29.0
      %vm173 = vcmp.ne.f32.partialorder %v157, %v157
      %v174 = vmul.f32 %v157, 16.0
      %v175 = vsel %vm173, -0.0, %v174
      %v176 = vsel %vm172, nan, %v175
      %v177 = vand.u32 2147483647, %v158
      %vm178 = vcmp.gt.f32.partialorder %v177, 29.0
      %vm179 = vcmp.ne.f32.partialorder %v158, %v158
      %v180 = vmul.f32 %v158, 16.0
      %v181 = vsel %vm179, -0.0, %v180
      %v182 = vsel %vm178, nan, %v181
    $region30: #{tpu_custom_call.1} parent=1
      #allocation13 [shape = 'u8[4096]{0}', space=vmem, size = 0x1000, scoped, tag = 'scoped memory for tpu_custom_call.1']
      %183 = vst [vmem:[#allocation13] sm:$0xff] %v59
      %v184 = vld [vmem:[#allocation13] sm:$0x3]
      %v185 = vunpack.c.0.f8e4m3b11 %v184
      %v186 = vunpack.c.1.f8e4m3b11 %v184
      %v187 = vunpack.c.2.f8e4m3b11 %v184
      %v188 = vunpack.c.3.f8e4m3b11 %v184
      %v189 = vand.u32 2147483647, %v185
      %vm190 = vcmp.gt.f32.partialorder %v189, 29.0
      %vm191 = vcmp.ne.f32.partialorder %v185, %v185
      %v192 = vmul.f32 %v185, 16.0
      %v193 = vsel %vm191, -0.0, %v192
      %v194 = vsel %vm190, nan, %v193
      %v195 = vand.u32 2147483647, %v186
      %vm196 = vcmp.gt.f32.partialorder %v195, 29.0
      %vm197 = vcmp.ne.f32.partialorder %v186, %v186
      %v198 = vmul.f32 %v186, 16.0
      %v199 = vsel %vm197, -0.0, %v198
      %v200 = vsel %vm196, nan, %v199
      %v201 = vand.u32 2147483647, %v187
      %vm202 = vcmp.gt.f32.partialorder %v201, 29.0
      %vm203 = vcmp.ne.f32.partialorder %v187, %v187
      %v204 = vmul.f32 %v187, 16.0
      %v205 = vsel %vm203, -0.0, %v204
      %v206 = vsel %vm202, nan, %v205
      %v207 = vand.u32 2147483647, %v188
      %vm208 = vcmp.gt.f32.partialorder %v207, 29.0
      %vm209 = vcmp.ne.f32.partialorder %v188, %v188
      %v210 = vmul.f32 %v188, 16.0
      %v211 = vsel %vm209, -0.0, %v210
      %v212 = vsel %vm208, nan, %v211
    $region31: #{tpu_custom_call.1} parent=1
      #allocation14 [shape = 'u8[4096]{0}', space=vmem, size = 0x1000, scoped, tag = 'scoped memory for tpu_custom_call.1']
      %213 = vst [vmem:[#allocation14] sm:$0xff] %v59
      %s214 = scalar_lea.vmem [#allocation14], 2
      %v215 = vld [vmem:[%s214] sm:$0x3]
      %v216 = vunpack.c.0.f8e4m3b11 %v215
      %v217 = vunpack.c.1.f8e4m3b11 %v215
      %v218 = vunpack.c.2.f8e4m3b11 %v215
      %v219 = vunpack.c.3.f8e4m3b11 %v215
      %v220 = vand.u32 2147483647, %v216
      %vm221 = vcmp.gt.f32.partialorder %v220, 29.0
      %vm222 = vcmp.ne.f32.partialorder %v216, %v216
      %v223 = vmul.f32 %v216, 16.0
      %v224 = vsel %vm222, -0.0, %v223
      %v225 = vsel %vm221, nan, %v224
      %v226 = vand.u32 2147483647, %v217
      %vm227 = vcmp.gt.f32.partialorder %v226, 29.0
      %vm228 = vcmp.ne.f32.partialorder %v217, %v217
      %v229 = vmul.f32 %v217, 16.0
      %v230 = vsel %vm228, -0.0, %v229
      %v231 = vsel %vm227, nan, %v230
      %v232 = vand.u32 2147483647, %v218
      %vm233 = vcmp.gt.f32.partialorder %v232, 29.0
      %vm234 = vcmp.ne.f32.partialorder %v218, %v218
      %v235 = vmul.f32 %v218, 16.0
      %v236 = vsel %vm234, -0.0, %v235
      %v237 = vsel %vm233, nan, %v236
      %v238 = vand.u32 2147483647, %v219
      %vm239 = vcmp.gt.f32.partialorder %v238, 29.0
      %vm240 = vcmp.ne.f32.partialorder %v219, %v219
      %v241 = vmul.f32 %v219, 16.0
      %v242 = vsel %vm240, -0.0, %v241
      %v243 = vsel %vm239, nan, %v242
    $region32: #{tpu_custom_call.1} parent=1
      #allocation15 [shape = 'u8[4096]{0}', space=vmem, size = 0x1000, scoped, tag = 'scoped memory for tpu_custom_call.1']
      %244 = vst [vmem:[#allocation15] sm:$0xff] %v59
      %s245 = scalar_lea.vmem [#allocation15], 4
      %v246 = vld [vmem:[%s245] sm:$0x3]
      %v247 = vunpack.c.0.f8e4m3b11 %v246
      %v248 = vunpack.c.1.f8e4m3b11 %v246
      %v249 = vunpack.c.2.f8e4m3b11 %v246
      %v250 = vunpack.c.3.f8e4m3b11 %v246
      %v251 = vand.u32 2147483647, %v247
      %vm252 = vcmp.gt.f32.partialorder %v251, 29.0
      %vm253 = vcmp.ne.f32.partialorder %v247, %v247
      %v254 = vmul.f32 %v247, 16.0
      %v255 = vsel %vm253, -0.0, %v254
      %v256 = vsel %vm252, nan, %v255
      %v257 = vand.u32 2147483647, %v248
      %vm258 = vcmp.gt.f32.partialorder %v257, 29.0
      %vm259 = vcmp.ne.f32.partialorder %v248, %v248
      %v260 = vmul.f32 %v248, 16.0
      %v261 = vsel %vm259, -0.0, %v260
      %v262 = vsel %vm258, nan, %v261
      %v263 = vand.u32 2147483647, %v249
      %vm264 = vcmp.gt.f32.partialorder %v263, 29.0
      %vm265 = vcmp.ne.f32.partialorder %v249, %v249
      %v266 = vmul.f32 %v249, 16.0
      %v267 = vsel %vm265, -0.0, %v266
      %v268 = vsel %vm264, nan, %v267
      %v269 = vand.u32 2147483647, %v250
      %vm270 = vcmp.gt.f32.partialorder %v269, 29.0
      %vm271 = vcmp.ne.f32.partialorder %v250, %v250
      %v272 = vmul.f32 %v250, 16.0
      %v273 = vsel %vm271, -0.0, %v272
      %v274 = vsel %vm270, nan, %v273
    $region33: #{tpu_custom_call.1} parent=1
      #allocation16 [shape = 'u8[4096]{0}', space=vmem, size = 0x1000, scoped, tag = 'scoped memory for tpu_custom_call.1']
      %275 = vst [vmem:[#allocation16] sm:$0xff] %v59
      %s276 = scalar_lea.vmem [#allocation16], 6
      %v277 = vld [vmem:[%s276] sm:$0x3]
      %v278 = vunpack.c.0.f8e4m3b11 %v277
      %v279 = vunpack.c.1.f8e4m3b11 %v277
      %v280 = vunpack.c.2.f8e4m3b11 %v277
      %v281 = vunpack.c.3.f8e4m3b11 %v277
      %v282 = vand.u32 2147483647, %v278
      %vm283 = vcmp.gt.f32.partialorder %v282, 29.0
      %vm284 = vcmp.ne.f32.partialorder %v278, %v278
      %v285 = vmul.f32 %v278, 16.0
      %v286 = vsel %vm284, -0.0, %v285
      %v287 = vsel %vm283, nan, %v286
      %v288 = vand.u32 2147483647, %v279
      %vm289 = vcmp.gt.f32.partialorder %v288, 29.0
      %vm290 = vcmp.ne.f32.partialorder %v279, %v279
      %v291 = vmul.f32 %v279, 16.0
      %v292 = vsel %vm290, -0.0, %v291
      %v293 = vsel %vm289, nan, %v292
      %v294 = vand.u32 2147483647, %v280
      %vm295 = vcmp.gt.f32.partialorder %v294, 29.0
      %vm296 = vcmp.ne.f32.partialorder %v280, %v280
      %v297 = vmul.f32 %v280, 16.0
      %v298 = vsel %vm296, -0.0, %v297
      %v299 = vsel %vm295, nan, %v298
      %v300 = vand.u32 2147483647, %v281
      %vm301 = vcmp.gt.f32.partialorder %v300, 29.0
      %vm302 = vcmp.ne.f32.partialorder %v281, %v281
      %v303 = vmul.f32 %v281, 16.0
      %v304 = vsel %vm302, -0.0, %v303
      %v305 = vsel %vm301, nan, %v304
    %v306 = vpack.c.bf16 %v102, %v71
    %v307 = vpack.c.bf16 %v164, %v133
    %v308 = vpack.c.bf16 %v225, %v194
    %v309 = vpack.c.bf16 %v287, %v256
    %v312 = vunpack.c.l.b16 %v56
    %v313 = vunpack.c.l.b16 %v57
    %v314 = vpack.c.b16 %v313, %v312
    %vm315 = vcmask 523264
    %v317 = vsel %vm315, %v314, 0
    %319 = vmatpush.bf16.msra.mxu0 0
    %320 = vmatpush.bf16.msra.mxu0 0
    %321 = vmatpush.bf16.msra.mxu0 0
    %322 = vmatpush.bf16.msra.mxu0 0
    %323 = vmatpush.bf16.msra.mxu0 %v309
    %324 = vmatpush.bf16.msra.mxu0 %v308
    %325 = vmatpush.bf16.msra.mxu0 %v307
    %326 = vmatpush.bf16.msra.mxu0 %v306
    %327 = vmatmul.bf16.gmra.mxu0 %v317
    %v328 = vpop.f32.mrf.mxu0
    %v329 = vadd.f32 0.0, %v328
    %v330 = vpop.f32.mrf.mxu0
    %v331 = vadd.f32 0.0, %v330
    %332 = vdwg.mxu0
    %v333 = vadd.f32 %v54, %v329
    %v334 = vadd.f32 %v55, %v331
    %335 = vst [vmem:[#allocation2] sm:$0xff] %v333
    %336 = vst [vmem:[#allocation2 + $0x8] sm:$0xff] %v334
    // Predicated region
    $region34: #{tpu_custom_call.1} parent=1 // pred_check
      %p337 = pneg %p48
    $region35: #{tpu_custom_call.1} parent=1 // pred_check_branch
      %339 = sbr.rel (%p337) target = $region37
    $region36: #{tpu_custom_call.1} parent=1 // pred_region
      %v340 = vld [vmem:[#allocation2] sm:$0xff]
      %v341 = vld [vmem:[#allocation2 + $0x8] sm:$0xff]
      %v342 = vld [vmem:[%s2] sm:$0x1]
      %v344 = vperm.slane %v342, 0
      %v346 = vadd.f32 %v340, %v344
      %v347 = vadd.f32 %v341, %v344
      %348 = vst [vmem:[#allocation8] sm:$0xff] %v346
      %349 = vst [vmem:[#allocation8 + $0x8] sm:$0xff] %v347
    $region37: #{tpu_custom_call.1} parent=1 // pred_fallthru
      _
    // Predicated region
    $region38: #{tpu_custom_call.1} parent=1 // pred_check
      _
    $region39: #{tpu_custom_call.1} parent=1 // pred_check_branch
      %351 = sbr.rel (0) target = $region41
    $region40: #{tpu_custom_call.1} parent=1 // pred_region
      %353 = vsyncadd [#allocation5], 0
      %s354 = sshll.u32 [#allocation8], 4
      %s355 = int_to_ptr.vmem [resolvable:$true] %s354
      %s356 = sshll.u32 %s3, 4
      %s357 = int_to_ptr.hbm [resolvable:$true] %s356
      %362 = dma.vmem_to_hbm [thread:$0]  %s355, 256, %s357, [#allocation5], 128, 128, 8
    $region41: #{tpu_custom_call.1} parent=1 // pred_fallthru
      _
    // Predicated region
    $region42: #{tpu_custom_call.1} parent=1 // pred_check
      _
    $region43: #{tpu_custom_call.1} parent=1 // pred_check_branch
      %364 = sbr.rel (0) target = $region45
    $region44: #{tpu_custom_call.1} parent=1 // pred_region
      %366 = dma.done [#allocation5], 256
    $region45: #{tpu_custom_call.1} parent=1 // pred_fallthru
      _
    %367 = vsyncpa [#allocation4], 1
    %368 = vsyncpa [#allocation7], 1
    %369 = vsyncpa [#allocation5], 1

</llo_original>
